<compile_context>
chip_gen: v5e
topology: v5e:2x2
jax: 0.10.0
libtpu: 0.0.40
codegen_flags: <defaults>
</compile_context>

<pallas_src>
import functools
import math

import jax
import jax.numpy as jnp
from jax.experimental import pallas as pl
from jax.experimental.pallas import tpu as pltpu


_LANE = 128                 # hidden feature dims padded to multiples of this
_SUBLANE = 8                # batch tiles padded to multiples of this
_DEFAULT_BATCH_TILE = 1024  # ~85% of HBM roofline regime for mem-bound tiles


def _round_up(x: int, m: int) -> int:
    return (x + m - 1) // m * m


def _default_compute_dtype():
    """bf16 MXU inputs on v6e/v7x (f32 accumulation keeps accuracy), else f32."""
    try:
        kind = jax.devices()[0].device_kind.lower()
    except Exception:
        return jnp.float32
    if any(tok in kind for tok in ("v6", "v7")):
        return jnp.bfloat16
    return jnp.float32


# ---------------------------------------------------------------------------
# Fused kernel: the whole MLP for one batch tile.
# refs = (w0, b0, w1, b1, ..., w_{L-1}, b_{L-1}, o_ref)
#   w_i : (Din_i, Dout_i)  pre-transposed, compute dtype, 0.909 pre-folded
#   b_i : (1, Dout_i)      float32
# ---------------------------------------------------------------------------
def _fused_mlp_kernel(x_ref, *refs, num_linear: int, compute_dtype):
    o_ref = refs[-1]
    wb = refs[:-1]
    h = x_ref[...].astype(compute_dtype)
    for i in range(num_linear):
        w = wb[2 * i][...]
        b = wb[2 * i + 1][...]
        y = jnp.dot(h, w, preferred_element_type=jnp.float32) + b  # f32 accumulate
        if i < num_linear - 1:
            y = y * jax.nn.sigmoid(y)          # plain silu; 0.909 folded into next W
            h = y.astype(compute_dtype)        # back to MXU dtype for next layer
        else:
            h = y
    o_ref[...] = h.astype(o_ref.dtype)


# ---------------------------------------------------------------------------
# Parameter handling (torch layout -> transposed / folded / padded kernel layout)
# Call prepare_mlp_params ONCE at setup; pass its result to mlp_forward_pallas.
# ---------------------------------------------------------------------------
def init_mlp_params(key, in_size, out_size, hidden_dim, num_layers):
    """torch.nn.Linear-style params: w (out, in), b (out,), U(-1/sqrt(fan_in), ...)."""
    dims = [in_size] + [hidden_dim] * num_layers + [out_size]
    params = []
    for i in range(len(dims) - 1):
        fan_in, fan_out = dims[i], dims[i + 1]
        key, kw, kb = jax.random.split(key, 3)
        bound = 1.0 / math.sqrt(fan_in)
        w = jax.random.uniform(kw, (fan_out, fan_in), jnp.float32, -bound, bound)
        b = jax.random.uniform(kb, (fan_out,), jnp.float32, -bound, bound)
        params.append((w, b))
    return params


def prepare_mlp_params(params, compute_dtype=None):
    """One-time prep: transpose to (in,out), fold the preceding LipSwish 0.909
    into every non-first weight (exact identity), zero-pad HIDDEN dims to 128.
    The network's true in_size / out_size stay unpadded."""
    if compute_dtype is None:
        compute_dtype = _default_compute_dtype()
    n = len(params)
    prepped = []
    for i, (w, b) in enumerate(params):
        out_f, in_f = w.shape
        w_t = w.T.astype(jnp.float32)                         # (in, out)
        if i > 0:
            w_t = jnp.float32(0.909) * w_t                    # fold prev activation scale
        in_pad = _round_up(in_f, _LANE) if i > 0 else in_f    # hidden inputs -> 128-pad
        out_pad = _round_up(out_f, _LANE) if i < n - 1 else out_f
        w_p = jnp.zeros((in_pad, out_pad), jnp.float32).at[:in_f, :out_f].set(w_t)
        b_p = jnp.zeros((1, out_pad), jnp.float32).at[0, :out_f].set(b)
        prepped.append((w_p.astype(compute_dtype), b_p))
    return prepped


# ---------------------------------------------------------------------------
# Batch tiling policy
# ---------------------------------------------------------------------------
def _choose_batch_tiling(B, batch_tile):
    B8 = _round_up(B, _SUBLANE)
    if batch_tile is not None:
        tb = min(_round_up(batch_tile, _SUBLANE), B8)
    elif B8 <= 2 * _SUBLANE:
        tb = B8                               # tiny batch: single tile, no grid
    else:
        # >=2 even tiles so both v7x TensorCores get work; cap tile at 1024 rows.
        tb = min(_DEFAULT_BATCH_TILE, _round_up(pl.cdiv(B8, 2), _SUBLANE))
    B_pad = _round_up(B8, tb)
    return tb, B_pad, B_pad // tb


def _resident_spec(shape):
    """Constant block (same index every grid step): keep it single-buffered."""
    try:
        return pl.BlockSpec(shape, lambda i: (0, 0), pipeline_mode=pl.Buffered(1))
    except TypeError:  # older jax without pipeline_mode kwarg
        return pl.BlockSpec(shape, lambda i: (0, 0))


# ---------------------------------------------------------------------------
# Forward wrapper (hot path: no param prep, no 128-lane padding of x / output)
# ---------------------------------------------------------------------------
def mlp_forward_pallas(x, kparams, *, batch_tile=None, out_dtype=jnp.float32):
    """x: (B, in_size); kparams: output of prepare_mlp_params (pre-padded)."""
    B, in_size = x.shape
    num_linear = len(kparams)
    out_size = kparams[-1][0].shape[1]          # unpadded: equals the module's out_size
    compute_dtype = kparams[0][0].dtype

    flat_params = [a for wb in kparams for a in wb]
    tb, B_pad, num_tiles = _choose_batch_tiling(B, batch_tile)

    x_in = x if B_pad == B else jnp.pad(x, ((0, B_pad - B), (0, 0)))

    kernel = functools.partial(
        _fused_mlp_kernel, num_linear=num_linear, compute_dtype=compute_dtype)

    # Cost estimate so XLA can schedule/overlap the custom call in a step loop.
    flops = 0
    transcendentals = 0
    bytes_accessed = (x_in.size * x_in.dtype.itemsize
                      + B_pad * out_size * jnp.dtype(out_dtype).itemsize)
    for i, (w, b) in enumerate(kparams):
        flops += 2 * B_pad * w.shape[0] * w.shape[1]
        bytes_accessed += w.size * w.dtype.itemsize + b.size * b.dtype.itemsize
        if i < num_linear - 1:
            transcendentals += B_pad * w.shape[1]
    cost = pl.CostEstimate(flops=flops, transcendentals=transcendentals,
                           bytes_accessed=bytes_accessed)

    out_shape = jax.ShapeDtypeStruct((B_pad, out_size), out_dtype)

    if num_tiles == 1:
        # Single tile: no grid -> no per-step pipeline prologue/epilogue.
        out_p = pl.pallas_call(kernel, out_shape=out_shape, cost_estimate=cost)(
            x_in, *flat_params)
    else:
        in_specs = [pl.BlockSpec((tb, in_size), lambda i: (i, 0))]
        for (w, b) in kparams:
            in_specs.append(_resident_spec(w.shape))   # VMEM-resident, single-buffered
            in_specs.append(_resident_spec(b.shape))
        out_specs = pl.BlockSpec((tb, out_size), lambda i: (i, 0))
        out_p = pl.pallas_call(
            kernel,
            grid=(num_tiles,),
            in_specs=in_specs,
            out_specs=out_specs,
            out_shape=out_shape,
            cost_estimate=cost,
            compiler_params=pltpu.CompilerParams(
                dimension_semantics=("parallel",),  # batch tiles across v7x's 2 TCs
            ),
        )(x_in, *flat_params)

    return out_p if B_pad == B else out_p[:B]


# ---------------------------------------------------------------------------
# Pure-JAX reference (mirrors the PyTorch module exactly)
# ---------------------------------------------------------------------------
def mlp_reference(x, params):
    n = len(params)
    h = x
    for i, (w, b) in enumerate(params):
        h = h @ w.T + b
        if i < n - 1:
            h = 0.909 * jax.nn.silu(h)   # LipSwish
    return h


if __name__ == "__main__":
    # MLP(in_size=4, out_size=3, hidden_dim=32, num_layers=2)
    in_size, out_size, hidden_dim, num_layers = 4, 3, 32, 2

    key = jax.random.PRNGKey(0)
    key, kx = jax.random.split(key)
    x = jax.random.normal(kx, (8, in_size), jnp.float32)
    params = init_mlp_params(key, in_size, out_size, hidden_dim, num_layers)

    # One-time parameter prep (hoisted out of the hot path).
    kparams_f32 = prepare_mlp_params(params, compute_dtype=jnp.float32)
    kparams_auto = prepare_mlp_params(params)      # bf16 on v6e/v7x, f32 elsewhere

    fwd = jax.jit(mlp_forward_pallas, static_argnames=("batch_tile", "out_dtype"))

    # 1) f32 path, tiny batch -> single tile, grid-free call.
    out = jax.block_until_ready(fwd(x, kparams_f32))
    ref = mlp_reference(x, params)
    assert out.shape == (8, out_size), out.shape
    assert jnp.allclose(out, ref, atol=1e-5, rtol=1e-4), (
        f"f32 mismatch: max abs err {float(jnp.max(jnp.abs(out - ref)))}")

    # 2) Grid path: B=40 -> two even 24-row tiles, weights VMEM-resident
    #    (single-buffered), batch axis parallel across TensorCores.
    key, kx2 = jax.random.split(key)
    x_big = jax.random.normal(kx2, (40, in_size), jnp.float32)
    out_big = jax.block_until_ready(fwd(x_big, kparams_f32))
    ref_big = mlp_reference(x_big, params)
    assert out_big.shape == (40, out_size), out_big.shape
    assert jnp.allclose(out_big, ref_big, atol=1e-5, rtol=1e-4), (
        f"grid-path mismatch: max abs err {float(jnp.max(jnp.abs(out_big - ref_big)))}")

    # 3) Auto compute dtype (bf16 MXU inputs on v6e/v7x; f32 accumulation).
    out_auto = jax.block_until_ready(fwd(x_big, kparams_auto))
    assert jnp.allclose(out_auto, ref_big, atol=5e-2, rtol=1e-1), (
        f"auto-dtype mismatch: max abs err {float(jnp.max(jnp.abs(out_auto - ref_big)))}")

    # 4) Explicit small batch_tile override (5 uneven tiles) still correct.
    out_t8 = jax.block_until_ready(fwd(x_big, kparams_f32, batch_tile=8))
    assert jnp.allclose(out_t8, ref_big, atol=1e-5, rtol=1e-4), (
        f"batch_tile=8 mismatch: max abs err {float(jnp.max(jnp.abs(out_t8 - ref_big)))}")

    print("KERNEL_OK")
</pallas_src>

<mosaic_0001>
module attributes {stable_mosaic.version = 11 : i64} {
  func.func @_fused_mlp_kernel(%arg0: memref<8x4xf32, #tpu.memory_space<vmem>>, %arg1: memref<4x128xf32, #tpu.memory_space<vmem>>, %arg2: memref<1x128xf32, #tpu.memory_space<vmem>>, %arg3: memref<128x128xf32, #tpu.memory_space<vmem>>, %arg4: memref<1x128xf32, #tpu.memory_space<vmem>>, %arg5: memref<128x3xf32, #tpu.memory_space<vmem>>, %arg6: memref<1x3xf32, #tpu.memory_space<vmem>>, %arg7: memref<8x3xf32, #tpu.memory_space<vmem>>) attributes {dimension_semantics = [], scalar_prefetch = 0 : i64, scratch_operands = 0 : i64, tpu.core_type = #tpu.core_type<tc>} {
    %c0 = arith.constant 0 : index
    %c0_0 = arith.constant 0 : index
    %0 = vector.load %arg0[%c0, %c0_0] : memref<8x4xf32, #tpu.memory_space<vmem>>, vector<8x4xf32>
    %c0_1 = arith.constant 0 : index
    %c0_2 = arith.constant 0 : index
    %1 = vector.load %arg1[%c0_1, %c0_2] : memref<4x128xf32, #tpu.memory_space<vmem>>, vector<4x128xf32>
    %c0_3 = arith.constant 0 : index
    %c0_4 = arith.constant 0 : index
    %2 = vector.load %arg2[%c0_3, %c0_4] : memref<1x128xf32, #tpu.memory_space<vmem>>, vector<1x128xf32>
    %cst = arith.constant dense<0.000000e+00> : vector<8x128xf32>
    %3 = tpu.matmul %0, %1, %cst {dimension_numbers = #tpu.dot_dimension_numbers<[1], [0], [0], [1], [0, 0, 1, 1], [], []>} : vector<8x4xf32>, vector<4x128xf32>, vector<8x128xf32> -> vector<8x128xf32>
    %4 = vector.broadcast %2 : vector<1x128xf32> to vector<8x128xf32>
    %5 = arith.addf %3, %4 : vector<8x128xf32>
    %6 = arith.negf %5 : vector<8x128xf32>
    %7 = math.exp %6 : vector<8x128xf32>
    %cst_5 = arith.constant 1.000000e+00 : f32
    %8 = vector.broadcast %cst_5 : f32 to vector<8x128xf32>
    %9 = arith.addf %8, %7 : vector<8x128xf32>
    %10 = arith.divf %8, %9 : vector<8x128xf32>
    %11 = arith.mulf %5, %10 : vector<8x128xf32>
    %c0_6 = arith.constant 0 : index
    %c0_7 = arith.constant 0 : index
    %12 = vector.load %arg3[%c0_6, %c0_7] : memref<128x128xf32, #tpu.memory_space<vmem>>, vector<128x128xf32>
    %c0_8 = arith.constant 0 : index
    %c0_9 = arith.constant 0 : index
    %13 = vector.load %arg4[%c0_8, %c0_9] : memref<1x128xf32, #tpu.memory_space<vmem>>, vector<1x128xf32>
    %cst_10 = arith.constant dense<0.000000e+00> : vector<8x128xf32>
    %14 = tpu.matmul %11, %12, %cst_10 {dimension_numbers = #tpu.dot_dimension_numbers<[1], [0], [0], [1], [0, 0, 1, 1], [], []>} : vector<8x128xf32>, vector<128x128xf32>, vector<8x128xf32> -> vector<8x128xf32>
    %15 = vector.broadcast %13 : vector<1x128xf32> to vector<8x128xf32>
    %16 = arith.addf %14, %15 : vector<8x128xf32>
    %17 = arith.negf %16 : vector<8x128xf32>
    %18 = math.exp %17 : vector<8x128xf32>
    %cst_11 = arith.constant 1.000000e+00 : f32
    %19 = vector.broadcast %cst_11 : f32 to vector<8x128xf32>
    %20 = arith.addf %19, %18 : vector<8x128xf32>
    %21 = arith.divf %19, %20 : vector<8x128xf32>
    %22 = arith.mulf %16, %21 : vector<8x128xf32>
    %c0_12 = arith.constant 0 : index
    %c0_13 = arith.constant 0 : index
    %23 = vector.load %arg5[%c0_12, %c0_13] : memref<128x3xf32, #tpu.memory_space<vmem>>, vector<128x3xf32>
    %c0_14 = arith.constant 0 : index
    %c0_15 = arith.constant 0 : index
    %24 = vector.load %arg6[%c0_14, %c0_15] : memref<1x3xf32, #tpu.memory_space<vmem>>, vector<1x3xf32>
    %cst_16 = arith.constant dense<0.000000e+00> : vector<8x3xf32>
    %25 = tpu.matmul %22, %23, %cst_16 {dimension_numbers = #tpu.dot_dimension_numbers<[1], [0], [0], [1], [0, 0, 1, 1], [], []>} : vector<8x128xf32>, vector<128x3xf32>, vector<8x3xf32> -> vector<8x3xf32>
    %26 = vector.broadcast %24 : vector<1x3xf32> to vector<8x3xf32>
    %27 = arith.addf %25, %26 : vector<8x3xf32>
    %c0_17 = arith.constant 0 : index
    %c0_18 = arith.constant 0 : index
    %28 = vector.load %arg7[%c0_17, %c0_18] : memref<8x3xf32, #tpu.memory_space<vmem>>, vector<8x3xf32>
    tpu.vector_store %arg7[%c0_17, %c0_18], %27 {strides = array<i32>} : memref<8x3xf32, #tpu.memory_space<vmem>>, vector<8x3xf32>,
    return
  }
}

</mosaic_0001>

<llo_original>
// kernel: mlp_forward_pallas.1
$region0: #{mlp_forward_pallas.1}
  #allocation0 [shape = 'u32[]', space=smem, size = 0x4, offset = 0x4, fixed_abs, tag = 'smem constant byte address 0x4 - core index']
  #allocation1 [shape = 'u32[72,128]{1,0:T(1,128)}', space=vmem, size = 0x9000, scoped, tag = 'internal scratch']
  %s0 = inlined_call_operand.vmem [shape: f32[8,4], index: 0, kind: input, shape index: {}]
  %s1 = inlined_call_operand.vmem [shape: f32[4,128], index: 1, kind: input, shape index: {}]
  %s2 = inlined_call_operand.vmem [shape: f32[1,128], index: 2, kind: input, shape index: {}]
  %s3 = inlined_call_operand.vmem [shape: f32[128,128], index: 3, kind: input, shape index: {}]
  %s4 = inlined_call_operand.vmem [shape: f32[1,128], index: 4, kind: input, shape index: {}]
  %s5 = inlined_call_operand.vmem [shape: f32[128,3], index: 5, kind: input, shape index: {}]
  %s6 = inlined_call_operand.vmem [shape: f32[1,3], index: 6, kind: input, shape index: {}]
  %s7 = inlined_call_operand.vmem [shape: f32[8,3], index: 7, kind: output, shape index: {}]
  %s8 = sld [smem:[#allocation0]]
  $region38: #{mlp_forward_pallas.1} parent=0
    _
  %s10 = ssub.s32 1, %s8
  %s11 = scalar_select 0, %s10, %s8
  // Predicated region
  $region2: #{mlp_forward_pallas.1} parent=0 // pred_check
    _
  $region3: #{mlp_forward_pallas.1} parent=0 // pred_check_branch
    %13 = sbr.rel (0) target = $region5
  $region4: #{mlp_forward_pallas.1} parent=0 // pred_region
    _
  $region5: #{mlp_forward_pallas.1} parent=0 // pred_fallthru
    _
  // Predicated region
  $region6: #{mlp_forward_pallas.1} parent=0 // pred_check
    _
  $region7: #{mlp_forward_pallas.1} parent=0 // pred_check_branch
    %15 = sbr.rel (0) target = $region9
  $region8: #{mlp_forward_pallas.1} parent=0 // pred_region
    _
  $region9: #{mlp_forward_pallas.1} parent=0 // pred_fallthru
    _
  // Predicated region
  $region10: #{mlp_forward_pallas.1} parent=0 // pred_check
    _
  $region11: #{mlp_forward_pallas.1} parent=0 // pred_check_branch
    %17 = sbr.rel (0) target = $region13
  $region12: #{mlp_forward_pallas.1} parent=0 // pred_region
    _
  $region13: #{mlp_forward_pallas.1} parent=0 // pred_fallthru
    _
  // Predicated region
  $region14: #{mlp_forward_pallas.1} parent=0 // pred_check
    _
  $region15: #{mlp_forward_pallas.1} parent=0 // pred_check_branch
    %19 = sbr.rel (0) target = $region17
  $region16: #{mlp_forward_pallas.1} parent=0 // pred_region
    _
  $region17: #{mlp_forward_pallas.1} parent=0 // pred_fallthru
    _
  // Predicated region
  $region18: #{mlp_forward_pallas.1} parent=0 // pred_check
    _
  $region19: #{mlp_forward_pallas.1} parent=0 // pred_check_branch
    %21 = sbr.rel (0) target = $region21
  $region20: #{mlp_forward_pallas.1} parent=0 // pred_region
    _
  $region21: #{mlp_forward_pallas.1} parent=0 // pred_fallthru
    _
  // Predicated region
  $region22: #{mlp_forward_pallas.1} parent=0 // pred_check
    _
  $region23: #{mlp_forward_pallas.1} parent=0 // pred_check_branch
    %23 = sbr.rel (0) target = $region25
  $region24: #{mlp_forward_pallas.1} parent=0 // pred_region
    _
  $region25: #{mlp_forward_pallas.1} parent=0 // pred_fallthru
    _
  // Predicated region
  $region26: #{mlp_forward_pallas.1} parent=0 // pred_check
    _
  $region27: #{mlp_forward_pallas.1} parent=0 // pred_check_branch
    %25 = sbr.rel (0) target = $region29
  $region28: #{mlp_forward_pallas.1} parent=0 // pred_region
    _
  $region29: #{mlp_forward_pallas.1} parent=0 // pred_fallthru
    _
  %v26 = vld [vmem:[%s0] sm:$0xff]
  %v27 = vld [vmem:[%s1] sm:$0xf]
  %v28 = vld [vmem:[%s2] sm:$0x1]
  %v30 = vperm.slane %v28, 0
  %vm32 = vcmask 31744
  %v34 = vsel %vm32, %v26, 0
  %vm36 = vcmask 1043456
  %v38 = vsel %vm36, %v27, 0
  %40 = vmatpush.msra.mxu0 0.0
  %41 = vmatpush.msra.mxu0 0.0
  %42 = vmatpush.msra.mxu0 0.0
  %43 = vmatpush.msra.mxu0 0.0
  %44 = vmatpush.msra.mxu0 0.0
  %45 = vmatpush.msra.mxu0 0.0
  %46 = vmatpush.msra.mxu0 0.0
  %47 = vmatpush.msra.mxu0 0.0
  %48 = vmatpush.msra.mxu0 0.0
  %49 = vmatpush.msra.mxu0 0.0
  %50 = vmatpush.msra.mxu0 0.0
  %51 = vmatpush.msra.mxu0 0.0
  %52 = vmatpush.msra.mxu0 0.0
  %53 = vmatpush.msra.mxu0 0.0
  %54 = vmatpush.msra.mxu0 0.0
  %55 = vmatpush.msra.mxu0 %v38
  %56 = vmatmul.f32.gmra.mxu0 %v34
  %v57 = vpop.f32.mrf.mxu0
  %v58 = vadd.f32 %v30, %v57
  %59 = vdwg.mxu0
  %v60 = vxor.u32 %v58, 2147483648
  %v61 = vmul.f32 %v60, 1.442695
  %v62 = vpow.pop %v61
  %v63 = vadd.f32 %v62, 1.0
  %v64 = vrcp.pop %v63
  %v65 = vmul.f32 %v63, %v64
  %v66 = vsub.f32 1.0, %v65
  %v67 = vmul.f32 %v64, %v66
  %v68 = vadd.f32 %v64, %v67
  %vm69 = vweird.f32 %v63
  %vm70 = vweird.f32 %v64
  %vm71 = vmor %vm69, %vm70
  %v72 = vsel %vm71, %v64, %v68
  %v73 = vand.u32 2147483647, %v63
  %vm74 = vcmp.eq.f32.partialorder %v73, 8.507059e+37
  %v75 = vand.u32 %v63, 2147483648
  %v76 = vor.u32 1.1754944e-38, %v75
  %v77 = vsel %vm74, %v76, %v72
  %v78 = vmul.f32 1.0, %v77
  %v79 = vmul.f32 %v58, %v78
  %v80 = vld [vmem:[%s3] sm:$0xff]
  %v81 = vld [vmem:[%s3 + $0x8] sm:$0xff]
  %v82 = vld [vmem:[%s3 + $0x10] sm:$0xff]
  %v83 = vld [vmem:[%s3 + $0x18] sm:$0xff]
  %v84 = vld [vmem:[%s3 + $0x20] sm:$0xff]
  %v85 = vld [vmem:[%s3 + $0x28] sm:$0xff]
  %v86 = vld [vmem:[%s3 + $0x30] sm:$0xff]
  %v87 = vld [vmem:[%s3 + $0x38] sm:$0xff]
  %v88 = vld [vmem:[%s3 + $0x40] sm:$0xff]
  %v89 = vld [vmem:[%s3 + $0x48] sm:$0xff]
  %v90 = vld [vmem:[%s3 + $0x50] sm:$0xff]
  %v91 = vld [vmem:[%s3 + $0x58] sm:$0xff]
  %v92 = vld [vmem:[%s3 + $0x60] sm:$0xff]
  %v93 = vld [vmem:[%s3 + $0x68] sm:$0xff]
  %v94 = vld [vmem:[%s3 + $0x70] sm:$0xff]
  %v95 = vld [vmem:[%s3 + $0x78] sm:$0xff]
  %v96 = vld [vmem:[%s4] sm:$0x1]
  %v98 = vperm.slane %v96, 0
  %100 = vmatpush.msra.mxu0 %v95
  %101 = vmatpush.msra.mxu0 %v94
  %102 = vmatpush.msra.mxu0 %v93
  %103 = vmatpush.msra.mxu0 %v92
  %104 = vmatpush.msra.mxu0 %v91
  %105 = vmatpush.msra.mxu0 %v90
  %106 = vmatpush.msra.mxu0 %v89
  %107 = vmatpush.msra.mxu0 %v88
  %108 = vmatpush.msra.mxu0 %v87
  %109 = vmatpush.msra.mxu0 %v86
  %110 = vmatpush.msra.mxu0 %v85
  %111 = vmatpush.msra.mxu0 %v84
  %112 = vmatpush.msra.mxu0 %v83
  %113 = vmatpush.msra.mxu0 %v82
  %114 = vmatpush.msra.mxu0 %v81
  %115 = vmatpush.msra.mxu0 %v80
  %116 = vmatmul.f32.gmra.mxu0 %v79
  %v117 = vpop.f32.mrf.mxu0
  %v118 = vadd.f32 %v98, %v117
  %119 = vdwg.mxu0
  %v120 = vxor.u32 %v118, 2147483648
  %v121 = vmul.f32 %v120, 1.442695
  %v122 = vpow.pop %v121
  %v123 = vadd.f32 %v122, 1.0
  %v124 = vrcp.pop %v123
  %v125 = vmul.f32 %v123, %v124
  %v126 = vsub.f32 1.0, %v125
  %v127 = vmul.f32 %v124, %v126
  %v128 = vadd.f32 %v124, %v127
  %vm129 = vweird.f32 %v123
  %vm130 = vweird.f32 %v124
  %vm131 = vmor %vm129, %vm130
  %v132 = vsel %vm131, %v124, %v128
  %v133 = vand.u32 2147483647, %v123
  %vm134 = vcmp.eq.f32.partialorder %v133, 8.507059e+37
  %v135 = vand.u32 %v123, 2147483648
  %v136 = vor.u32 1.1754944e-38, %v135
  %v137 = vsel %vm134, %v136, %v132
  %v138 = vmul.f32 1.0, %v137
  %v139 = vmul.f32 %v118, %v138
  %v140 = vld [vmem:[%s5] sm:$0xff]
  %v141 = vld [vmem:[%s5 + $0x8] sm:$0xff]
  %v142 = vld [vmem:[%s5 + $0x10] sm:$0xff]
  %v143 = vld [vmem:[%s5 + $0x18] sm:$0xff]
  %v144 = vld [vmem:[%s5 + $0x20] sm:$0xff]
  %v145 = vld [vmem:[%s5 + $0x28] sm:$0xff]
  %v146 = vld [vmem:[%s5 + $0x30] sm:$0xff]
  %v147 = vld [vmem:[%s5 + $0x38] sm:$0xff]
  %v148 = vld [vmem:[%s5 + $0x40] sm:$0xff]
  %v149 = vld [vmem:[%s5 + $0x48] sm:$0xff]
  %v150 = vld [vmem:[%s5 + $0x50] sm:$0xff]
  %v151 = vld [vmem:[%s5 + $0x58] sm:$0xff]
  %v152 = vld [vmem:[%s5 + $0x60] sm:$0xff]
  %v153 = vld [vmem:[%s5 + $0x68] sm:$0xff]
  %v154 = vld [vmem:[%s5 + $0x70] sm:$0xff]
  %v155 = vld [vmem:[%s5 + $0x78] sm:$0xff]
  %v156 = vld [vmem:[%s6] sm:$0x1]
  %v158 = vperm.slane %v156, 0
  %160 = vmatpush.msra.mxu0 %v155
  %161 = vmatpush.msra.mxu0 %v154
  %162 = vmatpush.msra.mxu0 %v153
  %163 = vmatpush.msra.mxu0 %v152
  %164 = vmatpush.msra.mxu0 %v151
  %165 = vmatpush.msra.mxu0 %v150
  %166 = vmatpush.msra.mxu0 %v149
  %167 = vmatpush.msra.mxu0 %v148
  %168 = vmatpush.msra.mxu0 %v147
  %169 = vmatpush.msra.mxu0 %v146
  %170 = vmatpush.msra.mxu0 %v145
  %171 = vmatpush.msra.mxu0 %v144
  %172 = vmatpush.msra.mxu0 %v143
  %173 = vmatpush.msra.mxu0 %v142
  %174 = vmatpush.msra.mxu0 %v141
  %175 = vmatpush.msra.mxu0 %v140
  %176 = vmatmul.f32.gmra.mxu0 %v139
  %v177 = vpop.f32.mrf.mxu0
  %v178 = vadd.f32 %v158, %v177
  %179 = vdwg.mxu0
  %vm180 = vcmask 23552
  %181 = vst.msk [vmem:[%s7] sm:$0xff] %vm180, %v178
  // Predicated region
  $region30: #{mlp_forward_pallas.1} parent=0 // pred_check
    _
  $region31: #{mlp_forward_pallas.1} parent=0 // pred_check_branch
    %183 = sbr.rel (0) target = $region33
  $region32: #{mlp_forward_pallas.1} parent=0 // pred_region
    _
  $region33: #{mlp_forward_pallas.1} parent=0 // pred_fallthru
    _
  // Predicated region
  $region34: #{mlp_forward_pallas.1} parent=0 // pred_check
    _
  $region35: #{mlp_forward_pallas.1} parent=0 // pred_check_branch
    %185 = sbr.rel (0) target = $region37
  $region36: #{mlp_forward_pallas.1} parent=0 // pred_region
    _
  $region37: #{mlp_forward_pallas.1} parent=0 // pred_fallthru
    _

</llo_original>
